<compile_context>
chip_gen: v7x
topology: tpu7x:2x2x1
jax: 0.10.0
libtpu: 0.0.40
codegen_flags: <defaults>
</compile_context>

<pallas_src>
import functools

import jax
import jax.numpy as jnp
from jax.experimental import pallas as pl
from jax.experimental.pallas import tpu as pltpu

LANE = 128                     # lane-dense last dim of the streamed slab
CHUNK_ROWS = 128               # rows per inner fori_loop step (f32: 64 KiB/operand)
TARGET_BLOCK_BYTES = 4 << 20   # ~4 MiB of input bytes per operand per grid step


def _round_up(n, m):
    return ((n + m - 1) // m) * m


def _sumsq_partial_kernel(x_ref, xp_ref, out_ref, *, row_tile, chunk_rows,
                          total_rows):
    """One grid step: fold a (row_tile, LANE) block of (x'-x)^2 into an
    (8, LANE) partial sum and write it to this step's own output slot."""
    i = pl.program_id(0)
    n_chunks = row_tile // chunk_rows
    block_row0 = i * row_tile

    def body(c, acc):
        off = pl.multiple_of(c * chunk_rows, chunk_rows)
        xv = x_ref[pl.ds(off, chunk_rows), :].astype(jnp.float32)
        xpv = xp_ref[pl.ds(off, chunk_rows), :].astype(jnp.float32)
        # Mask rows past the end of the real array (only the last, partial
        # block has any): the OOB region of the block holds unspecified data,
        # so zero the difference before squaring.  `limit` is scalar math.
        limit = total_rows - block_row0 - off
        row_ids = jax.lax.broadcasted_iota(jnp.int32, (chunk_rows, LANE), 0)
        d = jnp.where(row_ids < limit, xpv - xv, 0.0)
        dsq = d * d
        # Fold (chunk_rows, 128) down to one (8, 128) vreg via VPU adds only.
        return acc + jnp.sum(dsq.reshape(chunk_rows // 8, 8, LANE), axis=0)

    acc = jax.lax.fori_loop(0, n_chunks, body,
                            jnp.zeros((8, LANE), jnp.float32))
    out_ref[...] = acc[None, :, :]


def _sum_squared_diff(x, x_prime):
    """Streaming sum((x'-x)^2) over all elements via Pallas; returns f32 scalar."""
    assert x.shape == x_prime.shape
    n_total = int(x.size)
    itemsize = jnp.dtype(x.dtype).itemsize

    flat_x = x.reshape(-1)
    flat_xp = x_prime.reshape(-1)

    # Lane alignment.  Common case (n_total % 128 == 0): pure bitcast, no copy.
    if n_total % LANE != 0:
        # TODO(synk): this rare path still makes one full copy per input; zero
        # padding is exact for (x'-x)^2 because both operands get identical pads.
        pad = LANE - n_total % LANE
        flat_x = jnp.pad(flat_x, (0, pad))
        flat_xp = jnp.pad(flat_xp, (0, pad))
    rows = flat_x.size // LANE

    if rows >= CHUNK_ROWS:
        target_rows = max(CHUNK_ROWS, TARGET_BLOCK_BYTES // (LANE * itemsize))
        row_tile = min(target_rows, (rows // CHUNK_ROWS) * CHUNK_ROWS)
        chunk_rows = CHUNK_ROWS
    else:
        # Tiny input: single block / single chunk; round rows to a sublane
        # multiple (zero pad is exact; the copy is negligible at this size).
        if rows % 8 != 0:
            extra = (_round_up(rows, 8) - rows) * LANE
            flat_x = jnp.pad(flat_x, (0, extra))
            flat_xp = jnp.pad(flat_xp, (0, extra))
            rows = flat_x.size // LANE
        row_tile = rows
        chunk_rows = rows

    x2 = flat_x.reshape(rows, LANE)
    xp2 = flat_xp.reshape(rows, LANE)
    n_blocks = pl.cdiv(rows, row_tile)

    kernel = functools.partial(_sumsq_partial_kernel, row_tile=row_tile,
                               chunk_rows=chunk_rows, total_rows=rows)

    # 2 inputs x 2 pipeline buffers x block + headroom (v5e default is 16 MiB).
    block_bytes = row_tile * LANE * itemsize
    vmem_limit = int(min(64 << 20, max(16 << 20, 4 * block_bytes + (4 << 20))))

    cost = pl.CostEstimate(
        flops=3 * n_total, transcendentals=0,
        bytes_accessed=2 * n_total * itemsize + n_blocks * 8 * LANE * 4)

    partials = pl.pallas_call(
        kernel,
        out_shape=jax.ShapeDtypeStruct((n_blocks, 8, LANE), jnp.float32),
        grid=(n_blocks,),
        in_specs=[
            pl.BlockSpec((row_tile, LANE), lambda i: (i, 0)),   # x
            pl.BlockSpec((row_tile, LANE), lambda i: (i, 0)),   # x_prime
        ],
        out_specs=pl.BlockSpec((1, 8, LANE), lambda i: (i, 0, 0)),
        compiler_params=pltpu.CompilerParams(
            dimension_semantics=("parallel",),
            vmem_limit_bytes=vmem_limit),
        cost_estimate=cost,
    )(x2, xp2)

    return jnp.sum(partials)


def counterfactual_loss(y, y_prime, x, x_prime, alpha=1.0):
    """Pallas implementation of CounterfactualLoss.forward.

    y, y_prime : label tensors (e.g. shape (1,))
    x, x_prime : image tensors (any float dtype; accumulation is f32)
    Returns dict with 'x_loss' (scalar), 'y_loss' and 'total_loss' (shape of y).
    """
    # TODO(synk): loss_dict history bookkeeping (save_loss_history) is host-side
    # state in the PyTorch module and is intentionally not part of the kernel.
    n_total = int(x.size)
    sum_sq = _sum_squared_diff(x, x_prime)
    x_loss = sum_sq / jnp.float32(n_total)
    dy = y_prime.astype(jnp.float32) - y.astype(jnp.float32)
    y_loss = jnp.float32(-alpha) * dy * dy
    total_loss = x_loss + y_loss
    return {"x_loss": x_loss, "y_loss": y_loss, "total_loss": total_loss}


if __name__ == "__main__":
    key = jax.random.PRNGKey(0)
    k1, k2, k3, k4 = jax.random.split(key, 4)
    alpha = 1.0

    def ref_losses(y, y_prime, x, x_prime):
        xf = x.astype(jnp.float32)
        xpf = x_prime.astype(jnp.float32)
        x_loss = jnp.mean(jnp.square(xpf - xf))
        y_loss = -alpha * jnp.square(
            y_prime.astype(jnp.float32) - y.astype(jnp.float32))
        return x_loss, y_loss, x_loss + y_loss

    y = jax.random.normal(k3, (1,), dtype=jnp.float32)
    y_prime = jax.random.normal(k4, (1,), dtype=jnp.float32)

    # Case 1: small NCHW batch, element count divisible by 128 (zero-copy path).
    x = jax.random.normal(k1, (2, 4, 16, 16), dtype=jnp.float32)
    xp = jax.random.normal(k2, (2, 4, 16, 16), dtype=jnp.float32)
    out = counterfactual_loss(y, y_prime, x, xp, alpha=alpha)
    jax.block_until_ready(out)
    xr, yr, tr = ref_losses(y, y_prime, x, xp)
    assert jnp.allclose(out["x_loss"], xr, rtol=1e-5, atol=1e-6)
    assert jnp.allclose(out["y_loss"], yr, rtol=1e-5, atol=1e-6)
    assert jnp.allclose(out["total_loss"], tr, rtol=1e-5, atol=1e-6)

    # Case 2: element count NOT divisible by 128 (tiny-pad fallback path).
    x_b = jax.random.normal(k2, (1, 3, 7, 11), dtype=jnp.float32)
    xp_b = jax.random.normal(k1, (1, 3, 7, 11), dtype=jnp.float32)
    out_b = counterfactual_loss(y, y_prime, x_b, xp_b, alpha=alpha)
    jax.block_until_ready(out_b)
    xr_b, _, tr_b = ref_losses(y, y_prime, x_b, xp_b)
    assert jnp.allclose(out_b["x_loss"], xr_b, rtol=1e-5, atol=1e-6)
    assert jnp.allclose(out_b["total_loss"], tr_b, rtol=1e-5, atol=1e-6)

    # Case 3: multi-block grid with a partially valid last block (in-kernel mask).
    x_c = jax.random.normal(k1, (2, 3, 48, 128), dtype=jnp.float32)  # rows = 288
    xp_c = jax.random.normal(k2, (2, 3, 48, 128), dtype=jnp.float32)
    out_c = counterfactual_loss(y, y_prime, x_c, xp_c, alpha=alpha)
    jax.block_until_ready(out_c)
    xr_c, _, tr_c = ref_losses(y, y_prime, x_c, xp_c)
    assert jnp.allclose(out_c["x_loss"], xr_c, rtol=1e-5, atol=1e-6)
    assert jnp.allclose(out_c["total_loss"], tr_c, rtol=1e-5, atol=1e-6)

    # Case 4: bf16 streaming (native-dtype DMA, f32 cast inside the kernel).
    x_d = jax.random.normal(k1, (2, 4, 32, 64), dtype=jnp.bfloat16)
    xp_d = jax.random.normal(k2, (2, 4, 32, 64), dtype=jnp.bfloat16)
    out_d = counterfactual_loss(y, y_prime, x_d, xp_d, alpha=alpha)
    jax.block_until_ready(out_d)
    xr_d, _, tr_d = ref_losses(y, y_prime, x_d, xp_d)
    assert jnp.allclose(out_d["x_loss"], xr_d, rtol=1e-4, atol=1e-5)
    assert jnp.allclose(out_d["total_loss"], tr_d, rtol=1e-4, atol=1e-5)

    print("KERNEL_OK")
</pallas_src>

<mosaic_0001>
module attributes {stable_mosaic.version = 11 : i64} {
  func.func @_sumsq_partial_kernel(%arg0: i32, %arg1: memref<16x128xf32, #tpu.memory_space<vmem>>, %arg2: memref<16x128xf32, #tpu.memory_space<vmem>>, %arg3: memref<1x8x128xf32, #tpu.memory_space<vmem>>) attributes {dimension_semantics = [#tpu.dimension_semantics<parallel>], iteration_bounds = array<i64: 1>, scalar_prefetch = 0 : i64, scratch_operands = 0 : i64, tpu.core_type = #tpu.core_type<tc>, window_params = [{transform_indices = @transform_0, window_bounds = array<i64: 16, 128>}, {transform_indices = @transform_1, window_bounds = array<i64: 16, 128>}, {transform_indices = @transform_2, window_bounds = array<i64: 1, 8, 128>}]} {
    %c16_i32 = arith.constant 16 : i32
    %0 = arith.muli %arg0, %c16_i32 : i32
    %cst = arith.constant 0.000000e+00 : f32
    %1 = vector.broadcast %cst : f32 to vector<8x128xf32>
    %c0_i32 = arith.constant 0 : i32
    %c16_i32_0 = arith.constant 16 : i32
    %2 = arith.muli %c0_i32, %c16_i32_0 : i32
    %3 = tpu.assume_multiple %2, 16 : i32
    %4 = arith.index_cast %3 : i32 to index
    %c0 = arith.constant 0 : index
    %5 = vector.load %arg1[%4, %c0] : memref<16x128xf32, #tpu.memory_space<vmem>>, vector<16x128xf32>
    %6 = arith.index_cast %3 : i32 to index
    %c0_1 = arith.constant 0 : index
    %7 = vector.load %arg2[%6, %c0_1] : memref<16x128xf32, #tpu.memory_space<vmem>>, vector<16x128xf32>
    %c16_i32_2 = arith.constant 16 : i32
    %8 = arith.subi %c16_i32_2, %0 : i32
    %9 = arith.subi %8, %3 : i32
    %10 = tpu.iota {dimensions = array<i32: 0>} : vector<16x128xi32>
    %11 = vector.broadcast %9 : i32 to vector<16x128xi32>
    %12 = arith.cmpi slt, %10, %11 : vector<16x128xi32>
    %13 = arith.subf %7, %5 : vector<16x128xf32>
    %cst_3 = arith.constant 0.000000e+00 : f32
    %14 = vector.broadcast %cst_3 : f32 to vector<16x128xf32>
    %15 = arith.select %12, %13, %14 : vector<16x128xi1>, vector<16x128xf32>
    %16 = arith.mulf %15, %15 : vector<16x128xf32>
    %17 = vector.shape_cast %16 : vector<16x128xf32> to vector<2x8x128xf32>
    %cst_4 = arith.constant dense<0.000000e+00> : vector<8x128xf32>
    %18 = vector.multi_reduction <add>, %17, %cst_4 [0] : vector<2x8x128xf32> to vector<8x128xf32>
    %19 = arith.addf %1, %18 : vector<8x128xf32>
    %c1_i32 = arith.constant 1 : i32
    %20 = vector.shape_cast %19 : vector<8x128xf32> to vector<1x8x128xf32>
    %c0_5 = arith.constant 0 : index
    %c0_6 = arith.constant 0 : index
    %c0_7 = arith.constant 0 : index
    %21 = vector.load %arg3[%c0_5, %c0_6, %c0_7] : memref<1x8x128xf32, #tpu.memory_space<vmem>>, vector<1x8x128xf32>
    tpu.vector_store %arg3[%c0_5, %c0_6, %c0_7], %20 {strides = array<i32>} : memref<1x8x128xf32, #tpu.memory_space<vmem>>, vector<1x8x128xf32>,
    return
  }
  func.func @transform_0(%arg0: i32) -> (i32, i32) {
    %c0_i32 = arith.constant 0 : i32
    %c0_i32_0 = arith.constant 0 : i32
    return %arg0, %c0_i32 : i32, i32
  }
  func.func @transform_1(%arg0: i32) -> (i32, i32) {
    %c0_i32 = arith.constant 0 : i32
    %c0_i32_0 = arith.constant 0 : i32
    return %arg0, %c0_i32 : i32, i32
  }
  func.func @transform_2(%arg0: i32) -> (i32, i32, i32) {
    %c0_i32 = arith.constant 0 : i32
    %c0_i32_0 = arith.constant 0 : i32
    %c0_i32_1 = arith.constant 0 : i32
    return %arg0, %c0_i32, %c0_i32_0 : i32, i32, i32
  }
}

</mosaic_0001>

<llo_original>
// kernel: tpu_custom_call.1
$region0: #{tpu_custom_call.1}
  #allocation0 [shape = 'u32[]', space=smem, size = 0x4, offset = 0x4, fixed_abs, tag = 'smem constant byte address 0x4 - core index']
  #allocation1 [shape = 'u32[144,128]{1,0:T(1,128)}', space=vmem, size = 0x12000, scoped, tag = 'internal scratch']
  %s0 = inlined_call_operand.hbm [shape: f32[16,128], index: 0, kind: input, shape index: {}]
  %s1 = inlined_call_operand.hbm [shape: f32[16,128], index: 1, kind: input, shape index: {}]
  %s2 = inlined_call_operand.hbm [shape: f32[1,8,128], index: 2, kind: output, shape index: {}]
  %s3 = sld [smem:[#allocation0]]
  $region26: #{tpu_custom_call.1} parent=0
    _
  %s5 = ssub.s32 1, %s3
  %s6 = scalar_select 0, %s5, %s3
  $region1: #{tpu_custom_call.1} parent=0
    #allocation2 [shape = 'u8[8192]{0}', space=vmem, size = 0x2000, scoped, tag = 'input window, operand 0, single buffered']
    #allocation3 [shape = 's32[1]{0}', space=sflag, size = 0x4, scoped, tag = 'scoped memory for tpu_custom_call.1']
    #allocation4 [shape = 's32[1]{0}', space=sflag, size = 0x4, scoped, tag = 'scoped memory for tpu_custom_call.1']
    #allocation5 [shape = 'u8[8192]{0}', space=vmem, size = 0x2000, scoped, tag = 'input window, operand 1, single buffered']
    #allocation6 [shape = 's32[1]{0}', space=sflag, size = 0x4, scoped, tag = 'scoped memory for tpu_custom_call.1']
    #allocation7 [shape = 'u8[4096]{0}', space=vmem, size = 0x1000, scoped, tag = 'output window, operand 0, single buffered']
    %7 = vsyncpa [#allocation3], 0
    %8 = vsyncpa [#allocation6], 0
    %9 = vsyncpa [#allocation4], 0
    // Predicated region
    $region2: #{tpu_custom_call.1} parent=1 // pred_check
      _
    $region3: #{tpu_custom_call.1} parent=1 // pred_check_branch
      %11 = sbr.rel (0) target = $region5
    $region4: #{tpu_custom_call.1} parent=1 // pred_region
      %s13 = ssub.s32 256, 256
      %14 = vsyncadd [#allocation3], %s13
      %s15 = sshll.u32 [#allocation2], 4
      %s16 = int_to_ptr.vmem [resolvable:$true] %s15
      %21 = dma.hbm_to_vmem [thread:$0]  %s0, 256, %s16, [#allocation3], 128, 128, 8
    $region5: #{tpu_custom_call.1} parent=1 // pred_fallthru
      _
    // Predicated region
    $region6: #{tpu_custom_call.1} parent=1 // pred_check
      _
    $region7: #{tpu_custom_call.1} parent=1 // pred_check_branch
      %23 = sbr.rel (0) target = $region9
    $region8: #{tpu_custom_call.1} parent=1 // pred_region
      %s25 = ssub.s32 256, 256
      %26 = vsyncadd [#allocation6], %s25
      %s27 = sshll.u32 [#allocation5], 4
      %s28 = int_to_ptr.vmem [resolvable:$true] %s27
      %33 = dma.hbm_to_vmem [thread:$0]  %s1, 256, %s28, [#allocation6], 128, 128, 8
    $region9: #{tpu_custom_call.1} parent=1 // pred_fallthru
      _
    // Predicated region
    $region10: #{tpu_custom_call.1} parent=1 // pred_check
      _
    $region11: #{tpu_custom_call.1} parent=1 // pred_check_branch
      %35 = sbr.rel (0) target = $region13
    $region12: #{tpu_custom_call.1} parent=1 // pred_region
      %36 = dma.done [#allocation3], 256
    $region13: #{tpu_custom_call.1} parent=1 // pred_fallthru
      _
    // Predicated region
    $region14: #{tpu_custom_call.1} parent=1 // pred_check
      _
    $region15: #{tpu_custom_call.1} parent=1 // pred_check_branch
      %38 = sbr.rel (0) target = $region17
    $region16: #{tpu_custom_call.1} parent=1 // pred_region
      %39 = dma.done [#allocation6], 256
    $region17: #{tpu_custom_call.1} parent=1 // pred_fallthru
      _
    %s40 = smul.u32 0, 16
    %v41 = vld [vmem:[#allocation2] sm:$0xff]
    %v42 = vld [vmem:[#allocation2 + $0x8] sm:$0xff]
    %v43 = vld [vmem:[#allocation5] sm:$0xff]
    %v44 = vld [vmem:[#allocation5 + $0x8] sm:$0xff]
    %s45 = ssub.s32 16, %s40
    %s46 = ssub.s32 %s45, 0
    %v47 = vlaneseq
    %v48 = vshrl.u32 %v47, 7
    %v49 = vadd.s32 %v48, 8
    %v50 = vstv %s46
    %vm51 = vcmp.lt.s32.totalorder %v48, %v50
    %vm52 = vcmp.lt.s32.totalorder %v49, %v50
    %v53 = vsub.f32 %v43, %v41
    %v54 = vsub.f32 %v44, %v42
    %v55 = vsel %vm51, %v53, 0.0
    %v56 = vsel %vm52, %v54, 0.0
    %v57 = vmul.f32 %v55, %v55
    %v58 = vmul.f32 %v56, %v56
    %v59 = vadd.f32 %v57, %v58
    %v60 = vadd.f32 %v59, 0.0
    %61 = vst [vmem:[#allocation7] sm:$0xff] %v60
    // Predicated region
    $region18: #{tpu_custom_call.1} parent=1 // pred_check
      _
    $region19: #{tpu_custom_call.1} parent=1 // pred_check_branch
      %63 = sbr.rel (0) target = $region21
    $region20: #{tpu_custom_call.1} parent=1 // pred_region
      %s65 = ssub.s32 128, 128
      %66 = vsyncadd [#allocation4], %s65
      %s68 = sshll.u32 [#allocation7], 4
      %s69 = int_to_ptr.vmem [resolvable:$true] %s68
      %71 = dma.vmem_to_hbm [thread:$0]  %s69, 128, %s2, [#allocation4]
    $region21: #{tpu_custom_call.1} parent=1 // pred_fallthru
      _
    // Predicated region
    $region22: #{tpu_custom_call.1} parent=1 // pred_check
      _
    $region23: #{tpu_custom_call.1} parent=1 // pred_check_branch
      %73 = sbr.rel (0) target = $region25
    $region24: #{tpu_custom_call.1} parent=1 // pred_region
      %74 = dma.done [#allocation4], 128
    $region25: #{tpu_custom_call.1} parent=1 // pred_fallthru
      _
    %75 = vsyncpa [#allocation3], 1
    %76 = vsyncpa [#allocation6], 1
    %77 = vsyncpa [#allocation4], 1

</llo_original>
